<compile_context>
chip_gen: v5e
topology: v5e:2x2
jax: 0.10.0
libtpu: 0.0.40
codegen_flags: <defaults>
</compile_context>

<pallas_src>
import functools

import jax
import jax.numpy as jnp
from jax import lax
from jax.experimental import pallas as pl
from jax.experimental.pallas import tpu as pltpu


def _vq_kernel(x_ref, emb_ref, q_ref, stats_ref):
    # x_ref:     (1, 1, D, TL)   activations for one (group, batch, hw-tile)
    # emb_ref:   (1, M, D)       this group's codebook (resident across b, t)
    # q_ref:     (1, 1, D, TL)   quantized output (lane-dense on TL)
    # stats_ref: (1, 1, 8, LW)   packed per-tile partials:
    #                            lanes 0..M-1 = per-code counts, lane M = sqerr
    xt = x_ref[0, 0]                                       # (D, TL) f32
    emb = emb_ref[0]                                       # (M, D)  f32
    M, _ = emb.shape
    TL = xt.shape[1]
    LW = stats_ref.shape[-1]

    # ||e_m||^2 and the -2 scale folded into the small (M, D) operand.
    e2 = jnp.sum(emb * emb, axis=1, keepdims=True)         # (M, 1)
    e_scaled = emb * (-2.0)                                # (M, D)

    # dist(m, l) = ||e_m||^2 - 2 e_m . x_l
    # (the row-constant ||x_l||^2 term cannot change the argmin and is dropped)
    dist = e2 + lax.dot_general(
        e_scaled, xt, (((1,), (0,)), ((), ())),
        preferred_element_type=jnp.float32)                # (M, TL)

    # argmin over the code axis (axis 0) with first-match tie-breaking,
    # matching torch.argmin semantics (guaranteed-lowering formulation).
    min_d = jnp.min(dist, axis=0, keepdims=True)           # (1, TL)
    code_iota = lax.broadcasted_iota(jnp.int32, (M, TL), 0)
    idx = jnp.min(jnp.where(dist == min_d, code_iota, M),
                  axis=0, keepdims=True)                   # (1, TL)
    enc = (code_iota == idx).astype(jnp.float32)           # (M, TL) one-hot

    # Exact gather on the MXU: quant = emb^T @ enc  -> (D, TL)
    quant = lax.dot_general(
        emb, enc, (((0,), (0,)), ((), ())),
        preferred_element_type=jnp.float32)                # (D, TL)
    q_ref[0, 0] = quant.astype(q_ref.dtype)

    # Per-code counts on the MXU (it has slack in the mem-bound regime).
    ones_l = jnp.ones((1, TL), jnp.float32)
    counts = lax.dot_general(
        ones_l, enc, (((1,), (1,)), ((), ())),
        preferred_element_type=jnp.float32)                # (1, M)

    # Pad counts from M lanes to the lane-dense width LW via a tiny constant
    # "identity" projection (one extra (1,M)x(M,LW) MXU pass, negligible).
    proj = (lax.broadcasted_iota(jnp.int32, (M, LW), 0)
            == lax.broadcasted_iota(jnp.int32, (M, LW), 1)).astype(jnp.float32)
    counts_lw = lax.dot_general(
        counts, proj, (((1,), (0,)), ((), ())),
        preferred_element_type=jnp.float32)                # (1, LW)

    # Partial squared error for the commitment loss, packed into lane M.
    diff = xt - quant                                      # (D, TL)
    sqerr = jnp.sum(diff * diff).reshape(1, 1)             # (1, 1)
    lane = lax.broadcasted_iota(jnp.int32, (1, LW), 1)     # (1, LW)
    stats = jnp.where(lane == M, sqerr, counts_lw)         # (1, LW)

    # Single lane-dense (8, LW) store (rows are identical; wrapper reads row 0).
    stats_ref[0, 0] = jnp.broadcast_to(stats, (8, LW))


def _pick_tile_hw(hw, d, m, tile_hw):
    """Largest 128-multiple tile dividing H*W that fits the VMEM budget."""
    if tile_hw is not None:
        if hw % tile_hw != 0:
            raise ValueError(f"tile_hw={tile_hw} must divide H*W={hw}")
        return tile_hw
    # Rough per-lane-column f32 working set: double-buffered x/q tiles,
    # dist/enc/iota (M rows each), xt/quant/diff (D rows each), idx row.
    per_col_bytes = 4 * (4 * d + 3 * m + 2 * d + 2)
    budget = 8 * 1024 * 1024          # well under half of v7x's 64 MiB VMEM
    max_tl = (budget // per_col_bytes) // 128 * 128
    # 512-1024-wide lane tiles already hit ~85% of HBM roofline; larger tiles
    # mostly add vreg spills, so cap at 1024 (review items #2 + #6).
    max_tl = max(128, min(1024, max_tl))
    cand = max_tl
    while cand >= 128:
        if hw % cand == 0:
            return cand
        cand -= 128
    # No 128-multiple divisor: use the full extent (block dim == array dim is
    # always a legal BlockSpec; no padding -> counts/sqerr stay exact).
    return hw


@functools.partial(jax.jit, static_argnames=("commitment_cost", "tile_hw"))
def vq_embedding_forward(x, embedding, commitment_cost=0.25, tile_hw=None):
    """Eval-mode forward of VQEmbeddingEMA.

    x:         (B, C, H, W) float32, C = N * D
    embedding: (N, M, D) float32
    returns (quantized (B, C, H, W), loss scalar, perplexity scalar)
    """
    B, C, H, W = x.shape
    N, M, D = embedding.shape
    assert C == N * D
    HW = H * W
    L = B * HW
    LW = 128 * ((M + 1 + 127) // 128)   # lanes 0..M-1 = counts, lane M = sqerr
    assert M + 1 <= LW

    tl = _pick_tile_hw(HW, D, M, tile_hw)
    num_tiles = HW // tl

    # Free reshape (contiguous, no HBM copy): (B, C, H, W) -> (B, N, D, H*W).
    x_bnd = x.reshape(B, N, D, HW)

    grid = (N, B, num_tiles)

    grid_spec = pl.GridSpec(
        grid=grid,
        in_specs=[
            # activations: lane-dense on the hw axis
            pl.BlockSpec((1, 1, D, tl), lambda n, b, t: (b, n, 0, t)),
            # codebook: index_map independent of (b, t) -> resident in VMEM
            pl.BlockSpec((1, M, D), lambda n, b, t: (n, 0, 0)),
        ],
        out_specs=[
            pl.BlockSpec((1, 1, D, tl), lambda n, b, t: (b, n, 0, t)),
            # packed counts+sqerr partials, one (8, LW) lane-dense block/step
            pl.BlockSpec((1, 1, 8, LW),
                         lambda n, b, t: (n, b * num_tiles + t, 0, 0)),
        ],
    )

    # VMEM budget / cost hints.
    per_step_bytes = 4 * (
        2 * 2 * D * tl                 # double-buffered x and q tiles
        + 2 * M * D                    # resident codebook
        + (3 * M + 3 * D + 2) * tl     # live intermediates
        + 2 * 8 * LW)                  # stats blocks
    vmem_limit = int(min(32 * 1024 * 1024,
                         max(16 * 1024 * 1024, 2 * per_step_bytes)))
    flops = int(N * L * (4 * M * D + 4 * M + 6 * D))
    bytes_accessed = int(4 * (2 * N * L * D + N * M * D
                              + N * B * num_tiles * 8 * LW))

    q_bnd, stats = pl.pallas_call(
        _vq_kernel,
        grid_spec=grid_spec,
        out_shape=(
            jax.ShapeDtypeStruct((B, N, D, HW), x.dtype),
            jax.ShapeDtypeStruct((N, B * num_tiles, 8, LW), jnp.float32),
        ),
        compiler_params=pltpu.CompilerParams(
            dimension_semantics=("parallel", "parallel", "parallel"),
            vmem_limit_bytes=vmem_limit,
        ),
        cost_estimate=pl.CostEstimate(
            flops=flops, transcendentals=0, bytes_accessed=bytes_accessed),
    )(x_bnd, embedding)

    # Free reshape back: (B, N, D, H*W) -> (B, C, H, W).
    # Straight-through x + (q - x).detach() is numerically q in eval mode.
    quantized = q_bnd.reshape(B, C, H, W)

    # Unpack per-tile partials (row 0 of each (8, LW) block).
    stats_rows = stats[:, :, 0, :]                          # (N, B*T, LW)
    total_counts = jnp.sum(stats_rows[..., :M], axis=1)     # (N, M)
    sq_total = jnp.sum(stats_rows[..., M])                  # scalar

    # commitment loss: mse over the (N, B, H, W, D) tensor.
    e_latent_loss = sq_total / (N * L * D)
    loss = commitment_cost * e_latent_loss

    # perplexity: per-group, then summed (matches perplexity.sum()).
    avg_probs = total_counts / float(L)
    perplexity = jnp.exp(
        -jnp.sum(avg_probs * jnp.log(avg_probs + 1e-10), axis=-1))
    return quantized, loss, jnp.sum(perplexity)


if __name__ == "__main__":
    # Module config: latent_dim=N, num_embeddings=M, embedding_dim=D
    N, M, D = 2, 16, 16
    B, H, W = 2, 16, 16
    C = N * D  # 32

    key = jax.random.PRNGKey(0)
    k_emb, k_x = jax.random.split(key)

    # embedding.uniform_(-1/M, 1/M), deterministic
    embedding = jax.random.uniform(
        k_emb, (N, M, D), dtype=jnp.float32,
        minval=-1.0 / M, maxval=1.0 / M)
    x = jax.random.normal(k_x, (B, C, H, W), dtype=jnp.float32)

    # Let the tile picker choose (H*W = 256 -> single full-width tile).
    quantized, loss, perplexity = vq_embedding_forward(
        x, embedding, commitment_cost=0.25)
    jax.block_until_ready((quantized, loss, perplexity))

    assert quantized.shape == (B, C, H, W)
    assert quantized.dtype == x.dtype
    assert loss.shape == ()
    assert perplexity.shape == ()
    assert bool(jnp.all(jnp.isfinite(quantized)))
    assert bool(jnp.isfinite(loss)) and bool(jnp.isfinite(perplexity))

    print("KERNEL_OK")
</pallas_src>

<mosaic_0001>
module attributes {stable_mosaic.version = 11 : i64} {
  func.func @_vq_kernel(%arg0: i32, %arg1: i32, %arg2: i32, %arg3: memref<1x1x16x256xf32, #tpu.memory_space<vmem>>, %arg4: memref<1x16x16xf32, #tpu.memory_space<vmem>>, %arg5: memref<1x1x16x256xf32, #tpu.memory_space<vmem>>, %arg6: memref<1x1x8x128xf32, #tpu.memory_space<vmem>>) attributes {dimension_semantics = [#tpu.dimension_semantics<parallel>, #tpu.dimension_semantics<parallel>, #tpu.dimension_semantics<parallel>], iteration_bounds = array<i64: 2, 2, 1>, scalar_prefetch = 0 : i64, scratch_operands = 0 : i64, tpu.core_type = #tpu.core_type<tc>, window_params = [{transform_indices = @transform_0, window_bounds = array<i64: 1, 1, 16, 256>}, {transform_indices = @transform_1, window_bounds = array<i64: 1, 16, 16>}, {transform_indices = @transform_2, window_bounds = array<i64: 1, 1, 16, 256>}, {transform_indices = @transform_3, window_bounds = array<i64: 1, 1, 8, 128>}]} {
    %c0 = arith.constant 0 : index
    %c0_0 = arith.constant 0 : index
    %c0_1 = arith.constant 0 : index
    %c0_2 = arith.constant 0 : index
    %0 = vector.load %arg3[%c0, %c0_0, %c0_1, %c0_2] : memref<1x1x16x256xf32, #tpu.memory_space<vmem>>, vector<1x1x16x256xf32>
    %1 = vector.shape_cast %0 : vector<1x1x16x256xf32> to vector<16x256xf32>
    %c0_3 = arith.constant 0 : index
    %c0_4 = arith.constant 0 : index
    %c0_5 = arith.constant 0 : index
    %2 = vector.load %arg4[%c0_3, %c0_4, %c0_5] : memref<1x16x16xf32, #tpu.memory_space<vmem>>, vector<1x16x16xf32>
    %3 = vector.shape_cast %2 : vector<1x16x16xf32> to vector<16x16xf32>
    %4 = arith.mulf %3, %3 : vector<16x16xf32>
    %cst = arith.constant dense<0.000000e+00> : vector<16xf32>
    %5 = vector.multi_reduction <add>, %4, %cst [1] : vector<16x16xf32> to vector<16xf32>
    %6 = vector.shape_cast %5 : vector<16xf32> to vector<16x1xf32>
    %cst_6 = arith.constant -2.000000e+00 : f32
    %7 = vector.broadcast %cst_6 : f32 to vector<16x16xf32>
    %8 = arith.mulf %3, %7 : vector<16x16xf32>
    %cst_7 = arith.constant dense<0.000000e+00> : vector<16x256xf32>
    %9 = tpu.matmul %8, %1, %cst_7 {dimension_numbers = #tpu.dot_dimension_numbers<[1], [0], [0], [1], [0, 0, 1, 1], [], []>} : vector<16x16xf32>, vector<16x256xf32>, vector<16x256xf32> -> vector<16x256xf32>
    %10 = vector.broadcast %6 : vector<16x1xf32> to vector<16x256xf32>
    %11 = arith.addf %10, %9 : vector<16x256xf32>
    %cst_8 = arith.constant dense<0x7F800000> : vector<256xf32>
    %12 = vector.multi_reduction <minimumf>, %11, %cst_8 [0] : vector<16x256xf32> to vector<256xf32>
    %13 = vector.shape_cast %12 : vector<256xf32> to vector<1x256xf32>
    %14 = tpu.iota {dimensions = array<i32: 0>} : vector<16x256xi32>
    %15 = vector.broadcast %13 : vector<1x256xf32> to vector<16x256xf32>
    %16 = arith.cmpf oeq, %11, %15 : vector<16x256xf32>
    %c16_i32 = arith.constant 16 : i32
    %17 = vector.broadcast %c16_i32 : i32 to vector<16x256xi32>
    %18 = arith.select %16, %14, %17 : vector<16x256xi1>, vector<16x256xi32>
    %cst_9 = arith.constant dense<2147483647> : vector<256xi32>
    %19 = vector.multi_reduction <minsi>, %18, %cst_9 [0] : vector<16x256xi32> to vector<256xi32>
    %20 = vector.shape_cast %19 : vector<256xi32> to vector<1x256xi32>
    %21 = vector.broadcast %20 : vector<1x256xi32> to vector<16x256xi32>
    %22 = arith.cmpi eq, %14, %21 : vector<16x256xi32>
    %23 = arith.extui %22 : vector<16x256xi1> to vector<16x256xi32>
    %24 = arith.sitofp %23 : vector<16x256xi32> to vector<16x256xf32>
    %cst_10 = arith.constant dense<0.000000e+00> : vector<16x256xf32>
    %25 = tpu.matmul %3, %24, %cst_10 {dimension_numbers = #tpu.dot_dimension_numbers<[0], [0], [1], [1], [0, 1, 1, 1], [], []>} : vector<16x16xf32>, vector<16x256xf32>, vector<16x256xf32> -> vector<16x256xf32>
    %c0_11 = arith.constant 0 : index
    %c0_12 = arith.constant 0 : index
    %c0_13 = arith.constant 0 : index
    %c0_14 = arith.constant 0 : index
    %26 = vector.load %arg5[%c0_11, %c0_12, %c0_13, %c0_14] : memref<1x1x16x256xf32, #tpu.memory_space<vmem>>, vector<1x1x16x256xf32>
    %27 = vector.shape_cast %26 : vector<1x1x16x256xf32> to vector<16x256xf32>
    %28 = vector.shape_cast %25 : vector<16x256xf32> to vector<1x1x16x256xf32>
    tpu.vector_store %arg5[%c0_11, %c0_12, %c0_13, %c0_14], %28 {strides = array<i32>} : memref<1x1x16x256xf32, #tpu.memory_space<vmem>>, vector<1x1x16x256xf32>,
    %cst_15 = arith.constant 1.000000e+00 : f32
    %29 = vector.broadcast %cst_15 : f32 to vector<1x256xf32>
    %cst_16 = arith.constant dense<0.000000e+00> : vector<1x16xf32>
    %30 = tpu.matmul %29, %24, %cst_16 {dimension_numbers = #tpu.dot_dimension_numbers<[1], [1], [0], [0], [0, 0, 1, 0], [], []>} : vector<1x256xf32>, vector<16x256xf32>, vector<1x16xf32> -> vector<1x16xf32>
    %31 = tpu.iota {dimensions = array<i32: 0>} : vector<16x128xi32>
    %32 = tpu.iota {dimensions = array<i32: 1>} : vector<16x128xi32>
    %33 = arith.cmpi eq, %31, %32 : vector<16x128xi32>
    %34 = arith.extui %33 : vector<16x128xi1> to vector<16x128xi32>
    %35 = arith.sitofp %34 : vector<16x128xi32> to vector<16x128xf32>
    %cst_17 = arith.constant dense<0.000000e+00> : vector<1x128xf32>
    %36 = tpu.matmul %30, %35, %cst_17 {dimension_numbers = #tpu.dot_dimension_numbers<[1], [0], [0], [1], [0, 0, 1, 1], [], []>} : vector<1x16xf32>, vector<16x128xf32>, vector<1x128xf32> -> vector<1x128xf32>
    %37 = arith.subf %1, %25 : vector<16x256xf32>
    %38 = arith.mulf %37, %37 : vector<16x256xf32>
    %39 = vector.shape_cast %38 : vector<16x256xf32> to vector<1x16x256xf32>
    %cst_18 = arith.constant dense<0.000000e+00> : vector<1xf32>
    %40 = vector.multi_reduction <add>, %39, %cst_18 [1, 2] : vector<1x16x256xf32> to vector<1xf32>
    %41 = vector.shape_cast %40 : vector<1xf32> to vector<1x1x1xf32>
    %42 = vector.extract %41[0, 0, 0] : f32 from vector<1x1x1xf32>
    %43 = vector.broadcast %42 : f32 to vector<1x1xf32>
    %44 = tpu.iota {dimensions = array<i32: 1>} : vector<1x128xi32>
    %c16_i32_19 = arith.constant 16 : i32
    %45 = vector.broadcast %c16_i32_19 : i32 to vector<1x128xi32>
    %46 = arith.cmpi eq, %44, %45 : vector<1x128xi32>
    %47 = vector.shape_cast %43 : vector<1x1xf32> to vector<1x1xf32>
    %48 = vector.broadcast %47 : vector<1x1xf32> to vector<1x128xf32>
    %49 = arith.select %46, %48, %36 : vector<1x128xi1>, vector<1x128xf32>
    %50 = vector.shape_cast %49 : vector<1x128xf32> to vector<1x128xf32>
    %51 = vector.broadcast %50 : vector<1x128xf32> to vector<8x128xf32>
    %c0_20 = arith.constant 0 : index
    %c0_21 = arith.constant 0 : index
    %c0_22 = arith.constant 0 : index
    %c0_23 = arith.constant 0 : index
    %52 = vector.load %arg6[%c0_20, %c0_21, %c0_22, %c0_23] : memref<1x1x8x128xf32, #tpu.memory_space<vmem>>, vector<1x1x8x128xf32>
    %53 = vector.shape_cast %52 : vector<1x1x8x128xf32> to vector<8x128xf32>
    %54 = vector.shape_cast %51 : vector<8x128xf32> to vector<1x1x8x128xf32>
    tpu.vector_store %arg6[%c0_20, %c0_21, %c0_22, %c0_23], %54 {strides = array<i32>} : memref<1x1x8x128xf32, #tpu.memory_space<vmem>>, vector<1x1x8x128xf32>,
    return
  }
  func.func @transform_0(%arg0: i32, %arg1: i32, %arg2: i32) -> (i32, i32, i32, i32) {
    %c0_i32 = arith.constant 0 : i32
    %c0_i32_0 = arith.constant 0 : i32
    return %arg1, %arg0, %c0_i32, %arg2 : i32, i32, i32, i32
  }
  func.func @transform_1(%arg0: i32, %arg1: i32, %arg2: i32) -> (i32, i32, i32) {
    %c0_i32 = arith.constant 0 : i32
    %c0_i32_0 = arith.constant 0 : i32
    %c0_i32_1 = arith.constant 0 : i32
    return %arg0, %c0_i32, %c0_i32_0 : i32, i32, i32
  }
  func.func @transform_2(%arg0: i32, %arg1: i32, %arg2: i32) -> (i32, i32, i32, i32) {
    %c0_i32 = arith.constant 0 : i32
    %c0_i32_0 = arith.constant 0 : i32
    return %arg1, %arg0, %c0_i32, %arg2 : i32, i32, i32, i32
  }
  func.func @transform_3(%arg0: i32, %arg1: i32, %arg2: i32) -> (i32, i32, i32, i32) {
    %c1_i32 = arith.constant 1 : i32
    %0 = arith.muli %arg1, %c1_i32 : i32
    %1 = arith.addi %0, %arg2 : i32
    %c0_i32 = arith.constant 0 : i32
    %c0_i32_0 = arith.constant 0 : i32
    %c0_i32_1 = arith.constant 0 : i32
    return %arg0, %1, %c0_i32, %c0_i32_0 : i32, i32, i32, i32
  }
}

</mosaic_0001>

<llo_original>
// kernel: vq_embedding_forward.1
$region0: #{vq_embedding_forward.1}
  #allocation0 [shape = 'u32[]', space=smem, size = 0x4, offset = 0x4, fixed_abs, tag = 'smem constant byte address 0x4 - core index']
  #allocation1 [shape = 'u32[72,128]{1,0:T(1,128)}', space=vmem, size = 0x9000, scoped, tag = 'internal scratch']
  %s0 = inlined_call_operand.vmem [shape: f32[2,2,16,256], index: 0, kind: input, shape index: {}]
  %s1 = inlined_call_operand.vmem [shape: f32[2,16,16], index: 1, kind: input, shape index: {}]
  %s2 = inlined_call_operand.vmem [shape: f32[2,2,16,256], index: 2, kind: output, shape index: {0}]
  %s3 = inlined_call_operand.vmem [shape: f32[2,2,8,128], index: 3, kind: output, shape index: {1}]
  %4 = xla_tuple %s2, %s3
  %s5 = sld [smem:[#allocation0]]
  $region49: #{vq_embedding_forward.1} parent=0
    _
  %s7 = ssub.s32 1, %s5
  %s8 = scalar_select 0, %s7, %s5
  loop: start=0, step=1, limit=6
  $region2: #{vq_embedding_forward.1} parent=0 // loop_pre_header
    _
  $region3: #{vq_embedding_forward.1} parent=0 // loop_header
    %s10 = sphi 0, %s14
    %p11 = scmp.ge.s32.totalorder %s10, 6
    %s17 = sphi 0, %s36
    %s18 = sphi 0, %s32
    %s19 = sphi 0, %s28
    %s20 = sphi 0, %s17
    %s21 = sphi 0, %s18
    %s22 = sphi 0, %s19
    %s23 = sphi 0, %s20
    %s24 = sphi 0, %s21
    %s25 = sphi 0, %s22
    %s43 = sphi 0, %s45
    %s46 = sphi 0, %s43
    %s47 = sphi 0, %s46
    %s63 = sphi 0, %s47
    %s69 = sphi 0, %s71
    %s72 = sphi 0, %s69
    %s73 = sphi 0, %s72
    %s89 = sphi 0, %s73
    %s99 = sphi 0, %s101
    %s102 = sphi 0, %s99
    %s103 = sphi 0, %s102
    %s119 = sphi 0, %s103
    %s129 = sphi 0, %s131
    %s132 = sphi 0, %s129
    %s133 = sphi 0, %s132
    %s149 = sphi 0, %s133
  $region4: #{vq_embedding_forward.1} parent=0 // loop_header_branch
    %13 = sbr.rel (%p11) target = $region8
  $region5: #{vq_embedding_forward.1} parent=0 // loop_body
    %s15 = ssub.s32 %s10, 1
    %s16 = ssub.s32 %s10, 2
    %s26 = sadd.s32 1, %s19
    %p27 = scmp.ge.s32.totalorder %s26, 1
    %s28 = scalar_select %p27, 0, %s26
    %s29 = sadd.s32 1, %s18
    %s30 = scalar_select %p27, %s29, %s18
    %p31 = scmp.ge.s32.totalorder %s30, 2
    %s32 = scalar_select %p31, 0, %s30
    %s33 = sadd.s32 1, %s17
    %s34 = scalar_select %p31, %s33, %s17
    %p35 = scmp.ge.s32.totalorder %s34, 2
    %s36 = scalar_select %p35, 0, %s34
    %s37 = ssub.s32 %s18, %s32
    %s38 = ssub.s32 %s17, %s36
    %s39 = sor.u32 %s37, %s38
    %s40 = ssub.s32 %s19, %s28
    %s41 = sor.u32 %s39, %s40
    %p42 = scmp.eq.s32.totalorder %s41, 0
    %s44 = sadd.s32 %s43, 1
    %s45 = scalar_select %p42, %s43, %s44
    %p48 = pneg %p42
    %p49 = scmp.eq.s32.totalorder %s10, 3
    %p50 = por %p48, %p49
    %p51 = scmp.ne.s32.totalorder %s43, %s46
    %p52 = scmp.eq.s32.totalorder %s10, 0
    %p53 = por %p51, %p52
    %p54 = scmp.ne.s32.totalorder %s43, %s46
    %p55 = scmp.eq.s32.totalorder %s15, 3
    %p56 = por %p54, %p55
    %p57 = scmp.ne.s32.totalorder %s46, %s47
    %p58 = scmp.eq.s32.totalorder %s15, 0
    %p59 = por %p57, %p58
    %p60 = scmp.ne.s32.totalorder %s46, %s47
    %p61 = scmp.eq.s32.totalorder %s16, 3
    %p62 = por %p60, %p61
    %p64 = scmp.ne.s32.totalorder %s47, %s63
    %p65 = scmp.eq.s32.totalorder %s16, 0
    %p66 = por %p64, %p65
    %s67 = ssub.s32 %s17, %s36
    %p68 = scmp.eq.s32.totalorder %s67, 0
    %s70 = sadd.s32 %s69, 1
    %s71 = scalar_select %p68, %s69, %s70
    %p74 = pneg %p68
    %p75 = scmp.eq.s32.totalorder %s10, 3
    %p76 = por %p74, %p75
    %p77 = scmp.ne.s32.totalorder %s69, %s72
    %p78 = scmp.eq.s32.totalorder %s10, 0
    %p79 = por %p77, %p78
    %p80 = scmp.ne.s32.totalorder %s69, %s72
    %p81 = scmp.eq.s32.totalorder %s15, 3
    %p82 = por %p80, %p81
    %p83 = scmp.ne.s32.totalorder %s72, %s73
    %p84 = scmp.eq.s32.totalorder %s15, 0
    %p85 = por %p83, %p84
    %p86 = scmp.ne.s32.totalorder %s72, %s73
    %p87 = scmp.eq.s32.totalorder %s16, 3
    %p88 = por %p86, %p87
    %p90 = scmp.ne.s32.totalorder %s73, %s89
    %p91 = scmp.eq.s32.totalorder %s16, 0
    %p92 = por %p90, %p91
    %s93 = ssub.s32 %s18, %s32
    %s94 = ssub.s32 %s17, %s36
    %s95 = sor.u32 %s93, %s94
    %s96 = ssub.s32 %s19, %s28
    %s97 = sor.u32 %s95, %s96
    %p98 = scmp.eq.s32.totalorder %s97, 0
    %s100 = sadd.s32 %s99, 1
    %s101 = scalar_select %p98, %s99, %s100
    %p104 = pneg %p98
    %p105 = scmp.eq.s32.totalorder %s10, 3
    %p106 = por %p104, %p105
    %p107 = scmp.ne.s32.totalorder %s99, %s102
    %p108 = scmp.eq.s32.totalorder %s10, 0
    %p109 = por %p107, %p108
    %p110 = scmp.ne.s32.totalorder %s99, %s102
    %p111 = scmp.eq.s32.totalorder %s15, 3
    %p112 = por %p110, %p111
    %p113 = scmp.ne.s32.totalorder %s102, %s103
    %p114 = scmp.eq.s32.totalorder %s15, 0
    %p115 = por %p113, %p114
    %p116 = scmp.ne.s32.totalorder %s102, %s103
    %p117 = scmp.eq.s32.totalorder %s16, 3
    %p118 = por %p116, %p117
    %p120 = scmp.ne.s32.totalorder %s103, %s119
    %p121 = scmp.eq.s32.totalorder %s16, 0
    %p122 = por %p120, %p121
    %s123 = sadd.s32 %s18, %s19
    %s124 = sadd.s32 %s32, %s28
    %s125 = ssub.s32 %s17, %s36
    %s126 = ssub.s32 %s123, %s124
    %s127 = sor.u32 %s125, %s126
    %p128 = scmp.eq.s32.totalorder %s127, 0
    %s130 = sadd.s32 %s129, 1
    %s131 = scalar_select %p128, %s129, %s130
    %p134 = pneg %p128
    %p135 = scmp.eq.s32.totalorder %s10, 3
    %p136 = por %p134, %p135
    %p137 = scmp.ne.s32.totalorder %s129, %s132
    %p138 = scmp.eq.s32.totalorder %s10, 0
    %p139 = por %p137, %p138
    %p140 = scmp.ne.s32.totalorder %s129, %s132
    %p141 = scmp.eq.s32.totalorder %s15, 3
    %p142 = por %p140, %p141
    %p143 = scmp.ne.s32.totalorder %s132, %s133
    %p144 = scmp.eq.s32.totalorder %s15, 0
    %p145 = por %p143, %p144
    %p146 = scmp.ne.s32.totalorder %s132, %s133
    %p147 = scmp.eq.s32.totalorder %s16, 3
    %p148 = por %p146, %p147
    %p150 = scmp.ne.s32.totalorder %s133, %s149
    %p151 = scmp.eq.s32.totalorder %s16, 0
    %p152 = por %p150, %p151
    %p153 = scmp.le.s32.totalorder 1, %s10
    %p154 = scmp.lt.s32.totalorder %s10, 5
    %p155 = pnand %p153, %p154
    %p156 = pneg %p155
    // Predicated region
    $region9: #{vq_embedding_forward.1} parent=5 // pred_check
      _
    $region10: #{vq_embedding_forward.1} parent=5 // pred_check_branch
      %158 = sbr.rel (%p155) target = $region12
    $region11: #{vq_embedding_forward.1} parent=5 // pred_region
      %s159 = ssub.s32 %s10, 1
    $region12: #{vq_embedding_forward.1} parent=5 // pred_fallthru
      _
    %p160 = scmp.lt.s32.totalorder %s10, 4
    // Predicated region
    $region13: #{vq_embedding_forward.1} parent=5 // pred_check
      %p161 = pneg %p160
    $region14: #{vq_embedding_forward.1} parent=5 // pred_check_branch
      %163 = sbr.rel (%p161) target = $region16
    $region15: #{vq_embedding_forward.1} parent=5 // pred_region
      // Predicated region
      $region17: #{vq_embedding_forward.1} parent=15 // pred_check
        %p164 = pneg %p53
      $region18: #{vq_embedding_forward.1} parent=15 // pred_check_branch
        %166 = sbr.rel (%p164) target = $region20
      $region19: #{vq_embedding_forward.1} parent=15 // pred_region
        %s167 = smul.u32 2, %s19
        %p168 = scmp.lt.s32.totalorder %s18, 1
        %s169 = scalar_select %p168, %s18, 1
        %p170 = scmp.lt.s32.totalorder %s17, 1
        %s171 = scalar_select %p170, %s17, 1
        %p172 = scmp.lt.s32.totalorder %s167, 1
        %s173 = scalar_select %p172, %s167, 1
        %s174 = smul.addr %s171, 4
        %s175 = sadd.s32 %s173, %s174
        %s176 = smul.addr %s169, 8
        %s177 = sadd.s32 %s175, %s176
        %s178 = smul.addr %s177, 8
        %s179 = scalar_lea.vmem %s0, %s178
        %s180 = smul.u32 2, %s19
      $region20: #{vq_embedding_forward.1} parent=15 // pred_fallthru
        _
      // Predicated region
      $region21: #{vq_embedding_forward.1} parent=15 // pred_check
        %p181 = pneg %p79
      $region22: #{vq_embedding_forward.1} parent=15 // pred_check_branch
        %183 = sbr.rel (%p181) target = $region24
      $region23: #{vq_embedding_forward.1} parent=15 // pred_region
        %p184 = scmp.lt.s32.totalorder %s17, 1
        %s185 = scalar_select %p184, %s17, 1
        %s186 = smul.addr %s185, 2
        %s187 = smul.addr %s186, 8
        %s188 = scalar_lea.vmem %s1, %s187
      $region24: #{vq_embedding_forward.1} parent=15 // pred_fallthru
        _
    $region16: #{vq_embedding_forward.1} parent=5 // pred_fallthru
      _
    %p189 = scmp.le.s32.totalorder 1, %s10
    %p190 = scmp.lt.s32.totalorder %s10, 5
    %p191 = pnand %p189, %p190
    %p192 = pneg %p191
    // Predicated region
    $region25: #{vq_embedding_forward.1} parent=5 // pred_check
      _
    $region26: #{vq_embedding_forward.1} parent=5 // pred_check_branch
      %194 = sbr.rel (%p191) target = $region28
    $region27: #{vq_embedding_forward.1} parent=5 // pred_region
      %s195 = ssub.s32 %s10, 1
      %s196 = smul.u32 2, %s22
      %p197 = scmp.lt.s32.totalorder %s21, 1
      %s198 = scalar_select %p197, %s21, 1
      %p199 = scmp.lt.s32.totalorder %s20, 1
      %s200 = scalar_select %p199, %s20, 1
      %p201 = scmp.lt.s32.totalorder %s196, 1
      %s202 = scalar_select %p201, %s196, 1
      %s203 = smul.addr %s200, 4
      %s204 = sadd.s32 %s202, %s203
      %s205 = smul.addr %s198, 8
      %s206 = sadd.s32 %s204, %s205
      %s207 = smul.addr %s206, 8
      %s208 = scalar_lea.vmem %s0, %s207
      %p209 = pneg %p59
      %p210 = pneg %p56
      %p211 = scmp.lt.s32.totalorder %s20, 1
      %s212 = scalar_select %p211, %s20, 1
      %s213 = smul.addr %s212, 2
      %s214 = smul.addr %s213, 8
      %s215 = scalar_lea.vmem %s1, %s214
      %p216 = pneg %p85
      %p217 = pneg %p82
      %p218 = pneg %p115
      %p219 = pneg %p112
      %s220 = smul.u32 2, %s22
      %p221 = scmp.lt.s32.totalorder %s21, 1
      %s222 = scalar_select %p221, %s21, 1
      %p223 = scmp.lt.s32.totalorder %s20, 1
      %s224 = scalar_select %p223, %s20, 1
      %p225 = scmp.lt.s32.totalorder %s220, 1
      %s226 = scalar_select %p225, %s220, 1
      %s227 = smul.addr %s224, 4
      %s228 = sadd.s32 %s226, %s227
      %s229 = smul.addr %s222, 8
      %s230 = sadd.s32 %s228, %s229
      %s231 = smul.addr %s230, 8
      %s232 = scalar_lea.vmem %s2, %s231
      %p233 = pneg %p145
      %p234 = pneg %p142
      %s235 = sadd.s32 %s21, %s22
      %p236 = scmp.lt.s32.totalorder %s20, 1
      %s237 = scalar_select %p236, %s20, 1
      %p238 = scmp.lt.s32.totalorder %s235, 1
      %s239 = scalar_select %p238, %s235, 1
      %s240 = smul.addr %s237, 2
      %s241 = sadd.s32 %s239, %s240
      %s242 = smul.addr %s241, 8
      %s243 = scalar_lea.vmem %s3, %s242
      %s244 = smul.u32 2, %s22
      %p245 = scmp.lt.s32.totalorder %s21, 1
      %s246 = scalar_select %p245, %s21, 1
      %p247 = scmp.lt.s32.totalorder %s20, 1
      %s248 = scalar_select %p247, %s20, 1
      %p249 = scmp.lt.s32.totalorder %s244, 1
      %s250 = scalar_select %p249, %s244, 1
      %s251 = smul.addr %s248, 4
      %s252 = sadd.s32 %s250, %s251
      %s253 = smul.addr %s246, 8
      %s254 = sadd.s32 %s252, %s253
      %s255 = smul.addr %s254, 8
      %s256 = scalar_lea.vmem %s0, %s255
      %s257 = smul.u32 2, %s22
      %p258 = scmp.lt.s32.totalorder %s20, 1
      %s259 = scalar_select %p258, %s20, 1
      %s260 = smul.addr %s259, 2
      %s261 = smul.addr %s260, 8
      %s262 = scalar_lea.vmem %s1, %s261
      %s263 = smul.u32 2, %s22
      %p264 = scmp.lt.s32.totalorder %s21, 1
      %s265 = scalar_select %p264, %s21, 1
      %p266 = scmp.lt.s32.totalorder %s20, 1
      %s267 = scalar_select %p266, %s20, 1
      %p268 = scmp.lt.s32.totalorder %s263, 1
      %s269 = scalar_select %p268, %s263, 1
      %s270 = smul.addr %s267, 4
      %s271 = sadd.s32 %s269, %s270
      %s272 = smul.addr %s265, 8
      %s273 = sadd.s32 %s271, %s272
      %s274 = smul.addr %s273, 8
      %s275 = scalar_lea.vmem %s2, %s274
      %s276 = smul.u32 2, %s22
      %s277 = sadd.s32 %s21, %s22
      %p278 = scmp.lt.s32.totalorder %s20, 1
      %s279 = scalar_select %p278, %s20, 1
      %p280 = scmp.lt.s32.totalorder %s277, 1
      %s281 = scalar_select %p280, %s277, 1
      %s282 = smul.addr %s279, 2
      %s283 = sadd.s32 %s281, %s282
      %s284 = smul.addr %s283, 8
      %s285 = scalar_lea.vmem %s3, %s284
      %s286 = sadd.s32 %s21, %s22
      %v287 = vld [vmem:[%s256] sm:$0xff]
      %v288 = vld [vmem:[%s256 + $0x8] sm:$0xff]
      %v289 = vld [vmem:[%s256 + $0x10] sm:$0xff]
      %v290 = vld [vmem:[%s256 + $0x18] sm:$0xff]
      %v291 = vld [vmem:[%s262] sm:$0xff]
      %v292 = vld [vmem:[%s262 + $0x8] sm:$0xff]
      %v293 = vmul.f32 %v291, %v291
      %v294 = vmul.f32 %v292, %v292
      %vm295 = vcmask 130048
      %v296 = vsel %vm295, %v293, 0.0
      %297 = vadd.xlane.f32.xlu0 %v296
      %v298 = vpop.xlane.xlu0 %297
      %v299 = vsel %vm295, %v294, 0.0
      %300 = vadd.xlane.f32.xlu0 %v299
      %v301 = vpop.xlane.xlu0 %300
      %v302 = vmul.f32 %v291, -2.0
      %v303 = vmul.f32 %v292, -2.0
      %v305 = vsel %vm295, %v302, 0
      %v308 = vsel %vm295, %v303, 0
      %310 = vmatpush.msra.mxu0 0.0
      %311 = vmatpush.msra.mxu0 0.0
      %312 = vmatpush.msra.mxu0 0.0
      %313 = vmatpush.msra.mxu0 0.0
      %314 = vmatpush.msra.mxu0 0.0
      %315 = vmatpush.msra.mxu0 0.0
      %316 = vmatpush.msra.mxu0 0.0
      %317 = vmatpush.msra.mxu0 0.0
      %318 = vmatpush.msra.mxu0 0.0
      %319 = vmatpush.msra.mxu0 0.0
      %320 = vmatpush.msra.mxu0 0.0
      %321 = vmatpush.msra.mxu0 0.0
      %322 = vmatpush.msra.mxu0 0.0
      %323 = vmatpush.msra.mxu0 0.0
      %324 = vmatpush.msra.mxu0 %v289
      %325 = vmatpush.msra.mxu0 %v287
      %326 = vmatmul.f32.gmra.mxu0 %v305
      %v327 = vpop.f32.mrf.mxu0
      %v328 = vadd.f32 0.0, %v327
      %329 = vmatmul.f32.gmra.mxu0 %v308
      %v330 = vpop.f32.mrf.mxu0
      %v331 = vadd.f32 0.0, %v330
      %332 = vdwg.mxu0
      %333 = vmatpush.msra.mxu0 0.0
      %334 = vmatpush.msra.mxu0 0.0
      %335 = vmatpush.msra.mxu0 0.0
      %336 = vmatpush.msra.mxu0 0.0
      %337 = vmatpush.msra.mxu0 0.0
      %338 = vmatpush.msra.mxu0 0.0
      %339 = vmatpush.msra.mxu0 0.0
      %340 = vmatpush.msra.mxu0 0.0
      %341 = vmatpush.msra.mxu0 0.0
      %342 = vmatpush.msra.mxu0 0.0
      %343 = vmatpush.msra.mxu0 0.0
      %344 = vmatpush.msra.mxu0 0.0
      %345 = vmatpush.msra.mxu0 0.0
      %346 = vmatpush.msra.mxu0 0.0
      %347 = vmatpush.msra.mxu0 %v290
      %348 = vmatpush.msra.mxu0 %v288
      %349 = vmatmul.f32.gmra.mxu0 %v305
      %v350 = vpop.f32.mrf.mxu0
      %v351 = vadd.f32 0.0, %v350
      %352 = vmatmul.f32.gmra.mxu0 %v308
      %v353 = vpop.f32.mrf.mxu0
      %v354 = vadd.f32 0.0, %v353
      %355 = vdwg.mxu0
      %v356 = vadd.f32 %v298, %v328
      %v357 = vadd.f32 %v298, %v351
      %v358 = vadd.f32 %v301, %v331
      %v359 = vadd.f32 %v301, %v354
      %v360 = vmin.f32 %v356, %v358
      %v361 = vrot.slane %v360, 4
      %v362 = vmin.f32 %v360, %v361
      %v363 = vrot.slane %v362, 2
      %v364 = vmin.f32 %v362, %v363
      %v365 = vrot.slane %v364, 1
      %v366 = vmin.f32 %v364, %v365
      %v367 = vmin.f32 %v357, %v359
      %v368 = vrot.slane %v367, 4
      %v369 = vmin.f32 %v367, %v368
      %v370 = vrot.slane %v369, 2
      %v371 = vmin.f32 %v369, %v370
      %v372 = vrot.slane %v371, 1
      %v373 = vmin.f32 %v371, %v372
      %v374 = vlaneseq
      %v375 = vshrl.u32 %v374, 7
      %v376 = vadd.s32 %v375, 8
      %vm377 = vcmp.eq.f32.partialorder %v356, %v366
      %vm378 = vcmp.eq.f32.partialorder %v357, %v373
      %vm379 = vcmp.eq.f32.partialorder %v358, %v366
      %vm380 = vcmp.eq.f32.partialorder %v359, %v373
      %v381 = vsel %vm377, %v375, 16
      %v382 = vsel %vm378, %v375, 16
      %v383 = vsel %vm379, %v376, 16
      %v384 = vsel %vm380, %v376, 16
      %vm385 = vcmp.lt.s32.totalorder %v381, %v383
      %v386 = vsel %vm385, %v381, %v383
      %v387 = vrot.slane %v386, 4
      %vm388 = vcmp.lt.s32.totalorder %v386, %v387
      %v389 = vsel %vm388, %v386, %v387
      %v390 = vrot.slane %v389, 2
      %vm391 = vcmp.lt.s32.totalorder %v389, %v390
      %v392 = vsel %vm391, %v389, %v390
      %v393 = vrot.slane %v392, 1
      %vm394 = vcmp.lt.s32.totalorder %v392, %v393
      %v395 = vsel %vm394, %v392, %v393
      %vm396 = vcmp.lt.s32.totalorder %v382, %v384
      %v397 = vsel %vm396, %v382, %v384
      %v398 = vrot.slane %v397, 4
      %vm399 = vcmp.lt.s32.totalorder %v397, %v398
      %v400 = vsel %vm399, %v397, %v398
      %v401 = vrot.slane %v400, 2
      %vm402 = vcmp.lt.s32.totalorder %v400, %v401
      %v403 = vsel %vm402, %v400, %v401
      %v404 = vrot.slane %v403, 1
      %vm405 = vcmp.lt.s32.totalorder %v403, %v404
      %v406 = vsel %vm405, %v403, %v404
      %vm407 = vcmp.eq.s32.totalorder %v375, %v395
      %vm408 = vcmp.eq.s32.totalorder %v375, %v406
      %vm409 = vcmp.eq.s32.totalorder %v376, %v395
      %vm410 = vcmp.eq.s32.totalorder %v376, %v406
      %v411 = vsel %vm407, 1, 0
      %v412 = vsel %vm408, 1, 0
      %v413 = vsel %vm409, 1, 0
      %v414 = vsel %vm410, 1, 0
      %v415 = vcvt.s32.f32 %v411
      %v416 = vcvt.s32.f32 %v412
      %v417 = vcvt.s32.f32 %v413
      %v418 = vcvt.s32.f32 %v414
      %419 = vxpose.xlu0.b32.start [1/16] %v291, 128
      %420 = vxpose.xlu0.b32.cont [2/16] %v292, 128
      %421 = vxpose.xlu0.b32.cont [3/16] 0.0, 128
      %422 = vxpose.xlu0.b32.cont [4/16] 0.0, 128
      %423 = vxpose.xlu0.b32.cont [5/16] 0.0, 128
      %424 = vxpose.xlu0.b32.cont [6/16] 0.0, 128
      %425 = vxpose.xlu0.b32.cont [7/16] 0.0, 128
      %426 = vxpose.xlu0.b32.cont [8/16] 0.0, 128
      %427 = vxpose.xlu0.b32.cont [9/16] 0.0, 128
      %428 = vxpose.xlu0.b32.cont [10/16] 0.0, 128
      %429 = vxpose.xlu0.b32.cont [11/16] 0.0, 128
      %430 = vxpose.xlu0.b32.cont [12/16] 0.0, 128
      %431 = vxpose.xlu0.b32.cont [13/16] 0.0, 128
      %432 = vxpose.xlu0.b32.cont [14/16] 0.0, 128
      %433 = vxpose.xlu0.b32.cont [15/16] 0.0, 128
      %434 = vxpose.xlu0.b32.end [16/16] 0.0, 128
      %v435 = vpop.trf.xlu0
      %v436 = vpop.trf.xlu0
      %v437 = vpop.trf.xlu0
      %v438 = vpop.trf.xlu0
      %v439 = vpop.trf.xlu0
      %v440 = vpop.trf.xlu0
      %v441 = vpop.trf.xlu0
      %v442 = vpop.trf.xlu0
      %v443 = vpop.trf.xlu0
      %v444 = vpop.trf.xlu0
      %v445 = vpop.trf.xlu0
      %v446 = vpop.trf.xlu0
      %v447 = vpop.trf.xlu0
      %v448 = vpop.trf.xlu0
      %v449 = vpop.trf.xlu0
      %v450 = vpop.trf.xlu0
      %v452 = vsel %vm295, %v435, 0
      %v455 = vsel %vm295, %v436, 0
      %457 = vmatpush.msra.mxu0 0.0
      %458 = vmatpush.msra.mxu0 0.0
      %459 = vmatpush.msra.mxu0 0.0
      %460 = vmatpush.msra.mxu0 0.0
      %461 = vmatpush.msra.mxu0 0.0
      %462 = vmatpush.msra.mxu0 0.0
      %463 = vmatpush.msra.mxu0 0.0
      %464 = vmatpush.msra.mxu0 0.0
      %465 = vmatpush.msra.mxu0 0.0
      %466 = vmatpush.msra.mxu0 0.0
      %467 = vmatpush.msra.mxu0 0.0
      %468 = vmatpush.msra.mxu0 0.0
      %469 = vmatpush.msra.mxu0 0.0
      %470 = vmatpush.msra.mxu0 0.0
      %471 = vmatpush.msra.mxu0 %v417
      %472 = vmatpush.msra.mxu0 %v415
      %473 = vmatmul.f32.gmra.mxu0 %v452
      %v474 = vpop.f32.mrf.mxu0
      %v475 = vadd.f32 0.0, %v474
      %476 = vmatmul.f32.gmra.mxu0 %v455
      %v477 = vpop.f32.mrf.mxu0
      %v478 = vadd.f32 0.0, %v477
      %479 = vdwg.mxu0
      %480 = vmatpush.msra.mxu0 0.0
      %481 = vmatpush.msra.mxu0 0.0
      %482 = vmatpush.msra.mxu0 0.0
      %483 = vmatpush.msra.mxu0 0.0
      %484 = vmatpush.msra.mxu0 0.0
      %485 = vmatpush.msra.mxu0 0.0
      %486 = vmatpush.msra.mxu0 0.0
      %487 = vmatpush.msra.mxu0 0.0
      %488 = vmatpush.msra.mxu0 0.0
      %489 = vmatpush.msra.mxu0 0.0
      %490 = vmatpush.msra.mxu0 0.0
      %491 = vmatpush.msra.mxu0 0.0
      %492 = vmatpush.msra.mxu0 0.0
      %493 = vmatpush.msra.mxu0 0.0
      %494 = vmatpush.msra.mxu0 %v418
      %495 = vmatpush.msra.mxu0 %v416
      %496 = vmatmul.f32.gmra.mxu0 %v452
      %v497 = vpop.f32.mrf.mxu0
      %v498 = vadd.f32 0.0, %v497
      %499 = vmatmul.f32.gmra.mxu0 %v455
      %v500 = vpop.f32.mrf.mxu0
      %v501 = vadd.f32 0.0, %v500
      %502 = vdwg.mxu0
      %503 = vst [vmem:[%s275] sm:$0xff] %v475
      %504 = vst [vmem:[%s275 + $0x8] sm:$0xff] %v498
      %505 = vst [vmem:[%s275 + $0x10] sm:$0xff] %v478
      %506 = vst [vmem:[%s275 + $0x18] sm:$0xff] %v501
      %507 = vmatpush.xpose.msra.mxu0 0.0
      %508 = vmatpush.xpose.msra.mxu0 0.0
      %509 = vmatpush.xpose.msra.mxu0 0.0
      %510 = vmatpush.xpose.msra.mxu0 0.0
      %511 = vmatpush.xpose.msra.mxu0 0.0
      %512 = vmatpush.xpose.msra.mxu0 0.0
      %513 = vmatpush.xpose.msra.mxu0 0.0
      %514 = vmatpush.xpose.msra.mxu0 0.0
      %515 = vmatpush.xpose.msra.mxu0 0.0
      %516 = vmatpush.xpose.msra.mxu0 0.0
      %517 = vmatpush.xpose.msra.mxu0 0.0
      %518 = vmatpush.xpose.msra.mxu0 0.0
      %519 = vmatpush.xpose.msra.mxu0 0.0
      %520 = vmatpush.xpose.msra.mxu0 0.0
      %521 = vmatpush.xpose.msra.mxu0 %v417
      %522 = vmatpush.xpose.msra.mxu0 %v415
      %523 = vmatmul.f32.gmra.mxu0 1.0
      %v524 = vpop.f32.mrf.mxu0
      %v525 = vadd.f32 0.0, %v524
      %526 = vdwg.mxu0
      %527 = vmatpush.xpose.msra.mxu0 0.0
      %528 = vmatpush.xpose.msra.mxu0 0.0
      %529 = vmatpush.xpose.msra.mxu0 0.0
      %530 = vmatpush.xpose.msra.mxu0 0.0
      %531 = vmatpush.xpose.msra.mxu0 0.0
      %532 = vmatpush.xpose.msra.mxu0 0.0
      %533 = vmatpush.xpose.msra.mxu0 0.0
      %534 = vmatpush.xpose.msra.mxu0 0.0
      %535 = vmatpush.xpose.msra.mxu0 0.0
      %536 = vmatpush.xpose.msra.mxu0 0.0
      %537 = vmatpush.xpose.msra.mxu0 0.0
      %538 = vmatpush.xpose.msra.mxu0 0.0
      %539 = vmatpush.xpose.msra.mxu0 0.0
      %540 = vmatpush.xpose.msra.mxu0 0.0
      %541 = vmatpush.xpose.msra.mxu0 %v418
      %542 = vmatpush.xpose.msra.mxu0 %v416
      %543 = vmatmul.f32.gmra.mxu0 1.0
      %v544 = vpop.f32.mrf.mxu0
      %v545 = vadd.f32 %v525, %v544
      %546 = vdwg.mxu0
      %v547 = vlaneseq
      %v548 = vand.u32 %v547, 127
      %vm549 = vcmp.eq.s32.totalorder %v375, %v548
      %vm550 = vcmp.eq.s32.totalorder %v376, %v548
      %v551 = vsel %vm549, 1, 0
      %v552 = vsel %vm550, 1, 0
      %v553 = vcvt.s32.f32 %v551
      %v554 = vcvt.s32.f32 %v552
      %v556 = vsel %vm295, %v545, 0
      %558 = vmatpush.msra.mxu0 0.0
      %559 = vmatpush.msra.mxu0 0.0
      %560 = vmatpush.msra.mxu0 0.0
      %561 = vmatpush.msra.mxu0 0.0
      %562 = vmatpush.msra.mxu0 0.0
      %563 = vmatpush.msra.mxu0 0.0
      %564 = vmatpush.msra.mxu0 0.0
      %565 = vmatpush.msra.mxu0 0.0
      %566 = vmatpush.msra.mxu0 0.0
      %567 = vmatpush.msra.mxu0 0.0
      %568 = vmatpush.msra.mxu0 0.0
      %569 = vmatpush.msra.mxu0 0.0
      %570 = vmatpush.msra.mxu0 0.0
      %571 = vmatpush.msra.mxu0 0.0
      %572 = vmatpush.msra.mxu0 %v554
      %573 = vmatpush.msra.mxu0 %v553
      %574 = vmatmul.f32.gmra.mxu0 %v556
      %v575 = vpop.f32.mrf.mxu0
      %v576 = vadd.f32 0.0, %v575
      %577 = vdwg.mxu0
      %v578 = vsub.f32 %v287, %v475
      %v579 = vsub.f32 %v288, %v498
      %v580 = vsub.f32 %v289, %v478
      %v581 = vsub.f32 %v290, %v501
      %v582 = vmul.f32 %v578, %v578
      %v583 = vmul.f32 %v579, %v579
      %v584 = vmul.f32 %v580, %v580
      %v585 = vmul.f32 %v581, %v581
      %v586 = vadd.f32 %v582, %v583
      %v587 = vadd.f32 %v586, %v584
      %v588 = vadd.f32 %v587, %v585
      %589 = vadd.xlane.f32.xlu0 %v588
      %v590 = vpop.xlane.xlu0 %589
      %v591 = vrot.slane %v590, 4
      %v592 = vadd.f32 %v590, %v591
      %v593 = vrot.slane %v592, 2
      %v594 = vadd.f32 %v592, %v593
      %v595 = vrot.slane %v594, 1
      %v596 = vadd.f32 %v594, %v595
      %s597 = vtos %v596
      %vm598 = vcmp.eq.s32.totalorder %v548, 16
      %v599 = vstv %s597
      %v600 = vsel %vm598, %v599, %v576
      %v601 = vperm.slane %v600, 0
      %602 = vst [vmem:[%s285] sm:$0xff] %v601
      %s603 = smul.u32 2, %s22
      %p604 = scmp.lt.s32.totalorder %s21, 1
      %s605 = scalar_select %p604, %s21, 1
      %p606 = scmp.lt.s32.totalorder %s20, 1
      %s607 = scalar_select %p606, %s20, 1
      %p608 = scmp.lt.s32.totalorder %s603, 1
      %s609 = scalar_select %p608, %s603, 1
      %s610 = smul.addr %s607, 4
      %s611 = sadd.s32 %s609, %s610
      %s612 = smul.addr %s605, 8
      %s613 = sadd.s32 %s611, %s612
      %s614 = smul.addr %s613, 8
      %s615 = scalar_lea.vmem %s2, %s614
      %s616 = sadd.s32 %s21, %s22
      %p617 = scmp.lt.s32.totalorder %s20, 1
      %s618 = scalar_select %p617, %s20, 1
      %p619 = scmp.lt.s32.totalorder %s616, 1
      %s620 = scalar_select %p619, %s616, 1
      %s621 = smul.addr %s618, 2
      %s622 = sadd.s32 %s620, %s621
      %s623 = smul.addr %s622, 8
      %s624 = scalar_lea.vmem %s3, %s623
      // Predicated region
      $region29: #{vq_embedding_forward.1} parent=27 // pred_check
        %p625 = pneg %p112
      $region30: #{vq_embedding_forward.1} parent=27 // pred_check_branch
        %627 = sbr.rel (%p625) target = $region32
      $region31: #{vq_embedding_forward.1} parent=27 // pred_region
        %s628 = smul.u32 2, %s22
      $region32: #{vq_embedding_forward.1} parent=27 // pred_fallthru
        _
      // Predicated region
      $region33: #{vq_embedding_forward.1} parent=27 // pred_check
        %p629 = pneg %p142
      $region34: #{vq_embedding_forward.1} parent=27 // pred_check_branch
        %631 = sbr.rel (%p629) target = $region36
      $region35: #{vq_embedding_forward.1} parent=27 // pred_region
        %s632 = sadd.s32 %s21, %s22
      $region36: #{vq_embedding_forward.1} parent=27 // pred_fallthru
        _
    $region28: #{vq_embedding_forward.1} parent=5 // pred_fallthru
      _
    %p633 = scmp.le.s32.totalorder 2, %s10
    // Predicated region
    $region37: #{vq_embedding_forward.1} parent=5 // pred_check
      %p634 = pneg %p633
    $region38: #{vq_embedding_forward.1} parent=5 // pred_check_branch
      %636 = sbr.rel (%p634) target = $region40
    $region39: #{vq_embedding_forward.1} parent=5 // pred_region
      %s637 = ssub.s32 %s10, 2
      // Predicated region
      $region41: #{vq_embedding_forward.1} parent=39 // pred_check
        %p638 = pneg %p118
      $region42: #{vq_embedding_forward.1} parent=39 // pred_check_branch
        %640 = sbr.rel (%p638) target = $region44
      $region43: #{vq_embedding_forward.1} parent=39 // pred_region
        %s641 = smul.u32 2, %s25
        %p642 = scmp.lt.s32.totalorder %s24, 1
        %s643 = scalar_select %p642, %s24, 1
        %p644 = scmp.lt.s32.totalorder %s23, 1
        %s645 = scalar_select %p644, %s23, 1
        %p646 = scmp.lt.s32.totalorder %s641, 1
        %s647 = scalar_select %p646, %s641, 1
        %s648 = smul.addr %s645, 4
        %s649 = sadd.s32 %s647, %s648
        %s650 = smul.addr %s643, 8
        %s651 = sadd.s32 %s649, %s650
        %s652 = smul.addr %s651, 8
        %s653 = scalar_lea.vmem %s2, %s652
      $region44: #{vq_embedding_forward.1} parent=39 // pred_fallthru
        _
      // Predicated region
      $region45: #{vq_embedding_forward.1} parent=39 // pred_check
        %p654 = pneg %p148
      $region46: #{vq_embedding_forward.1} parent=39 // pred_check_branch
        %656 = sbr.rel (%p654) target = $region48
      $region47: #{vq_embedding_forward.1} parent=39 // pred_region
        %s657 = sadd.s32 %s24, %s25
        %p658 = scmp.lt.s32.totalorder %s23, 1
        %s659 = scalar_select %p658, %s23, 1
        %p660 = scmp.lt.s32.totalorder %s657, 1
        %s661 = scalar_select %p660, %s657, 1
        %s662 = smul.addr %s659, 2
        %s663 = sadd.s32 %s661, %s662
        %s664 = smul.addr %s663, 8
        %s665 = scalar_lea.vmem %s3, %s664
      $region48: #{vq_embedding_forward.1} parent=39 // pred_fallthru
        _
    $region40: #{vq_embedding_forward.1} parent=5 // pred_fallthru
      _
  $region6: #{vq_embedding_forward.1} parent=0 // loop_footer
    %s14 = sadd.s32 1, %s10
  $region7: #{vq_embedding_forward.1} parent=0 // loop_footer_branch
    %9 = sbr.rel target = $region3
  $region8: #{vq_embedding_forward.1} parent=0 // loop_exit
    _

</llo_original>
